<compile_context>
chip_gen: v6e
topology: v6e:2x2x1
jax: 0.10.0
libtpu: 0.0.40
codegen_flags: <defaults>
</compile_context>

<pallas_src>
import math
import functools

import jax
import jax.numpy as jnp
from jax import lax
from jax.experimental import pallas as pl
from jax.experimental.pallas import tpu as pltpu


# ---------------------------------------------------------------------------
# Generation-aware VMEM budget and tile selection
# ---------------------------------------------------------------------------
def _vmem_limit_bytes():
    """Scoped-VMEM limit: ~75% of physical VMEM, capped at 96 MiB."""
    cap = None
    try:
        cap = getattr(pltpu.get_tpu_info(), "vmem_capacity_bytes", None)
    except Exception:
        cap = None
    if not cap:
        cap = 64 * 1024 * 1024
    return min(int(cap) * 3 // 4, 96 * 1024 * 1024)


def _pick_tile(n, cap):
    """Largest tile <= cap dividing n, preferring 128/16/8 alignment.

    Falls back to the full dimension (always a legal single block).
    """
    if n <= cap:
        return n
    for align in (128, 16, 8):
        t = (cap // align) * align
        while t >= align:
            if n % t == 0:
                return t
            t -= align
    # TODO(synk): masked remainder tiles for awkward (e.g. prime) dims instead
    # of falling back to one full-dim block.
    return n


# ---------------------------------------------------------------------------
# Pallas kernel: plain linear  y = x @ Wt + b   (LoRA already folded into Wt)
# ---------------------------------------------------------------------------
def _linear_kernel(x_ref, wt_ref, b_ref, o_ref):
    # x: (TM, in) bf16, wt: (in, out) bf16 resident, b: (1, out) f32 resident.
    y = jnp.dot(x_ref[...], wt_ref[...], preferred_element_type=jnp.float32)
    o_ref[...] = (y + b_ref[...]).astype(o_ref.dtype)


def _linear_vmem_bytes(TM, c_in, c_out):
    act = jnp.dtype(jnp.bfloat16).itemsize
    return (2 * TM * c_in * act            # x blocks (double-buffered)
            + 2 * TM * c_out * act         # out blocks
            + 2 * (c_in * c_out * act + c_out * 4))   # resident Wt + bias


def fused_linear(x2d, wt, b2, *, m_tile=1024):
    """x2d: (M, in) bf16 -> (M, out) bf16; tiled over M, weights resident."""
    M, c_in = x2d.shape
    c_out = wt.shape[1]
    limit = _vmem_limit_bytes()
    budget = int(limit * 0.7)
    cap = m_tile
    while True:
        TM = _pick_tile(M, cap)
        if _linear_vmem_bytes(TM, c_in, c_out) <= budget or cap <= 128:
            break
        cap //= 2
    return pl.pallas_call(
        _linear_kernel,
        out_shape=jax.ShapeDtypeStruct((M, c_out), x2d.dtype),
        grid_spec=pltpu.PrefetchScalarGridSpec(
            num_scalar_prefetch=0,
            grid=(M // TM,),
            in_specs=[
                pl.BlockSpec((TM, c_in), lambda i: (i, 0)),
                pl.BlockSpec(wt.shape, lambda i: (0, 0)),   # resident weight
                pl.BlockSpec(b2.shape, lambda i: (0, 0)),   # resident bias
            ],
            out_specs=pl.BlockSpec((TM, c_out), lambda i: (i, 0)),
        ),
        compiler_params=pltpu.CompilerParams(
            dimension_semantics=("parallel",),
            vmem_limit_bytes=limit,
        ),
    )(x2d, wt, b2)


# ---------------------------------------------------------------------------
# Pallas kernel: flash attention (online softmax over KV tiles, all heads per
# step from lane-dense slabs) with the folded out_proj fused into finalize.
# ---------------------------------------------------------------------------
def _flash_attn_outproj_kernel(q_ref, k_ref, v_ref, wot_ref, bo_ref, o_ref,
                               m_sc, l_sc, acc_sc, *, num_heads):
    j = pl.program_id(2)

    @pl.when(j == 0)
    def _init():
        m_sc[...] = jnp.full(m_sc.shape, -jnp.inf, m_sc.dtype)
        l_sc[...] = jnp.zeros(l_sc.shape, l_sc.dtype)
        acc_sc[...] = jnp.zeros(acc_sc.shape, acc_sc.dtype)

    D = q_ref.shape[2]
    d = D // num_heads

    # Lane-dense (T, H*d) bf16 slabs; softmax scale already folded into q_proj.
    q2d = q_ref[0]       # (TQ, D)
    k2d = k_ref[0]       # (TK, D)
    v2d = v_ref[0]       # (TK, D)

    # Heads unrolled; static lane slices of the slabs (no head split/merge
    # transposes, no HBM round trips).  Softmax math stays in f32.
    for h in range(num_heads):
        lo, hi = h * d, (h + 1) * d
        qh = q2d[:, lo:hi]
        kh = k2d[:, lo:hi]
        vh = v2d[:, lo:hi]

        # 'qd,kd->qk' : bf16 operands, f32 accumulation on the MXU.
        s = lax.dot_general(qh, kh, (((1,), (1,)), ((), ())),
                            preferred_element_type=jnp.float32)    # (TQ, TK)

        m_prev = m_sc[:, h:h + 1]                                   # (TQ, 1)
        m_new = jnp.maximum(m_prev, s.max(axis=-1, keepdims=True))
        alpha = jnp.exp(m_prev - m_new)
        p = jnp.exp(s - m_new)                                      # f32
        l_sc[:, h:h + 1] = alpha * l_sc[:, h:h + 1] + p.sum(axis=-1, keepdims=True)
        # 'qk,kd->qd'
        pv = lax.dot_general(p.astype(vh.dtype), vh, (((1,), (0,)), ((), ())),
                             preferred_element_type=jnp.float32)    # (TQ, d)
        acc_sc[:, lo:hi] = alpha * acc_sc[:, lo:hi] + pv
        m_sc[:, h:h + 1] = m_new

    @pl.when(j == pl.num_programs(2) - 1)
    def _finalize():
        # Exact normalization (once per output tile), in place on the
        # lane-dense accumulator -> no head concat / relayout.
        inv_l = 1.0 / l_sc[...]                      # (TQ, H) f32
        for h in range(num_heads):
            lo, hi = h * d, (h + 1) * d
            acc_sc[:, lo:hi] = acc_sc[:, lo:hi] * inv_l[:, h:h + 1]
        attn2d = acc_sc[...].astype(wot_ref.dtype)   # (TQ, D) bf16
        # Fused out_proj (LoRA folded, pre-transposed to (D, E)).
        y = jnp.dot(attn2d, wot_ref[...], preferred_element_type=jnp.float32)
        o_ref[...] = (y + bo_ref[...])[None].astype(o_ref.dtype)


def _attn_vmem_bytes(TQ, TK, D, E, out_itemsize):
    act = jnp.dtype(jnp.bfloat16).itemsize
    return (2 * TQ * D * act              # q blocks (double-buffered)
            + 2 * 2 * TK * D * act        # k + v blocks
            + 2 * TQ * E * out_itemsize   # out blocks
            + 2 * (D * E * act + E * 4)   # resident Wo_t + bias
            + TQ * D * 4                  # acc scratch
            + 2 * TQ * 128 * 4)           # m / l scratch (lane padded)


def flash_attention_out_proj(q, k, v, wo_t, bo2, *, num_heads, out_dtype,
                             q_tile=512, kv_tile=1024):
    """q: (B, Nq, D), k/v: (B, Nk, D) bf16 -> (B, Nq, E) with fused out_proj."""
    B, Nq, D = q.shape
    _, Nk, _ = k.shape
    E = wo_t.shape[1]
    assert D % num_heads == 0

    limit = _vmem_limit_bytes()
    budget = int(limit * 0.7)
    out_isz = jnp.dtype(out_dtype).itemsize
    qc, kc = q_tile, kv_tile
    while True:
        TQ = _pick_tile(Nq, qc)
        TK = _pick_tile(Nk, kc)
        if (_attn_vmem_bytes(TQ, TK, D, E, out_isz) <= budget
                or (qc <= 128 and kc <= 128)):
            break
        if kc > 128:
            kc //= 2
        else:
            qc //= 2
    # Keep both v7x TensorCores busy: need >= 2 steps on the parallel axes.
    if B * (Nq // TQ) < 2 and TQ >= 16:
        TQ = _pick_tile(Nq, TQ // 2)

    kern = functools.partial(_flash_attn_outproj_kernel, num_heads=num_heads)
    return pl.pallas_call(
        kern,
        out_shape=jax.ShapeDtypeStruct((B, Nq, E), out_dtype),
        grid_spec=pltpu.PrefetchScalarGridSpec(
            num_scalar_prefetch=0,
            grid=(B, Nq // TQ, Nk // TK),
            in_specs=[
                pl.BlockSpec((1, TQ, D), lambda b, i, j: (b, i, 0)),
                pl.BlockSpec((1, TK, D), lambda b, i, j: (b, j, 0)),
                pl.BlockSpec((1, TK, D), lambda b, i, j: (b, j, 0)),
                pl.BlockSpec(wo_t.shape, lambda b, i, j: (0, 0)),   # resident
                pl.BlockSpec(bo2.shape, lambda b, i, j: (0, 0)),    # resident
            ],
            out_specs=pl.BlockSpec((1, TQ, E), lambda b, i, j: (b, i, 0)),
            scratch_shapes=[
                pltpu.VMEM((TQ, num_heads), jnp.float32),  # m (running max)
                pltpu.VMEM((TQ, num_heads), jnp.float32),  # l (running sum)
                pltpu.VMEM((TQ, D), jnp.float32),          # acc (lane-dense)
            ],
        ),
        compiler_params=pltpu.CompilerParams(
            dimension_semantics=("parallel", "parallel", "arbitrary"),
            vmem_limit_bytes=limit,
        ),
    )(q, k, v, wo_t, bo2)


# ---------------------------------------------------------------------------
# Parameters (PyTorch init scheme) and module forward
# ---------------------------------------------------------------------------
def init_lora_linear_params(key, in_features, out_features, rank, init_std=0.001):
    k1, k2, k3, k4 = jax.random.split(key, 4)
    bound = 1.0 / math.sqrt(in_features)
    w = jax.random.uniform(k1, (out_features, in_features), jnp.float32, -bound, bound)
    b = jax.random.uniform(k2, (out_features,), jnp.float32, -bound, bound)
    wd = init_std * jax.random.normal(k3, (rank, in_features), jnp.float32)
    wu = init_std * jax.random.normal(k4, (out_features, rank), jnp.float32)
    return dict(w=w, b=b, wd=wd, wu=wu)


def init_attention_with_lora_params(key, embedding_dim, num_heads,
                                    downsample_rate=1, kv_in_dim=None, rank=8):
    kv_in_dim = kv_in_dim if kv_in_dim is not None else embedding_dim
    internal_dim = embedding_dim // downsample_rate
    assert internal_dim % num_heads == 0
    kq, kk, kv, ko = jax.random.split(key, 4)
    return {
        'q_proj': init_lora_linear_params(kq, embedding_dim, internal_dim, rank),
        'k_proj': init_lora_linear_params(kk, kv_in_dim, internal_dim, rank),
        'v_proj': init_lora_linear_params(kv, kv_in_dim, internal_dim, rank),
        'out_proj': init_lora_linear_params(ko, internal_dim, embedding_dim, rank),
        'num_heads': num_heads,
        'internal_dim': internal_dim,
        'embedding_dim': embedding_dim,
    }


def _fold_lora(p, scale=None):
    """W_eff = W + Wu @ Wd in f32 (== linear + LoRA adapter), optionally
    pre-scaled, transposed to (in, out) and cast to bf16; bias kept f32."""
    w_eff = p['w'] + p['wu'] @ p['wd']          # (out, in) f32
    b_eff = p['b']
    if scale is not None:
        w_eff = w_eff * scale
        b_eff = b_eff * scale
    return w_eff.T.astype(jnp.bfloat16), b_eff.astype(jnp.float32).reshape(1, -1)


def attention_with_lora_forward(params, q, k, v):
    # dropout_p is 0.0 in eval mode, so dropout is a no-op (matches the module).
    H = params['num_heads']
    D = params['internal_dim']
    d = D // H
    scale = 1.0 / math.sqrt(d)      # folded into the q projection
    out_dtype = q.dtype

    wq_t, bq = _fold_lora(params['q_proj'], scale)
    wk_t, bk = _fold_lora(params['k_proj'])
    wv_t, bv = _fold_lora(params['v_proj'])
    wo_t, bo = _fold_lora(params['out_proj'])

    B, Nq, Eq = q.shape
    _, Nk, Ek = k.shape
    qb = q.astype(jnp.bfloat16).reshape(B * Nq, Eq)
    kb = k.astype(jnp.bfloat16).reshape(B * Nk, Ek)
    vb = v.astype(jnp.bfloat16).reshape(B * Nk, Ek)

    qp = fused_linear(qb, wq_t, bq).reshape(B, Nq, D)
    kp = fused_linear(kb, wk_t, bk).reshape(B, Nk, D)
    vp = fused_linear(vb, wv_t, bv).reshape(B, Nk, D)

    return flash_attention_out_proj(qp, kp, vp, wo_t, bo,
                                    num_heads=H, out_dtype=out_dtype)


# ---------------------------------------------------------------------------
# Reference (pure JAX, f32) for sanity check
# ---------------------------------------------------------------------------
def _ref_lora_linear(p, x):
    return x @ p['w'].T + p['b'] + (x @ p['wd'].T) @ p['wu'].T


def _ref_forward(params, q, k, v):
    H = params['num_heads']
    internal_dim = params['internal_dim']
    d = internal_dim // H
    q = _ref_lora_linear(params['q_proj'], q)
    k = _ref_lora_linear(params['k_proj'], k)
    v = _ref_lora_linear(params['v_proj'], v)
    B, Nq, _ = q.shape
    _, Nk, _ = k.shape
    qh = q.reshape(B, Nq, H, d).transpose(0, 2, 1, 3)
    kh = k.reshape(B, Nk, H, d).transpose(0, 2, 1, 3)
    vh = v.reshape(B, Nk, H, d).transpose(0, 2, 1, 3)
    s = jnp.einsum('bhqd,bhkd->bhqk', qh, kh) / math.sqrt(d)
    p = jax.nn.softmax(s, axis=-1)
    oh = jnp.einsum('bhqk,bhkd->bhqd', p, vh)
    o = oh.transpose(0, 2, 1, 3).reshape(B, Nq, internal_dim)
    return _ref_lora_linear(params['out_proj'], o)


if __name__ == "__main__":
    # Small config: embedding_dim=32, num_heads=4, rank=8, B=2, Nq=8, Nk=8
    EMB, HEADS, RANK = 32, 4, 8
    B, NQ, NK = 2, 8, 8

    key = jax.random.PRNGKey(0)
    kp, kq, kk, kv = jax.random.split(key, 4)

    params = init_attention_with_lora_params(kp, EMB, HEADS, rank=RANK)

    q = jax.random.normal(kq, (B, NQ, EMB), jnp.float32)
    k = jax.random.normal(kk, (B, NK, EMB), jnp.float32)
    v = jax.random.normal(kv, (B, NK, EMB), jnp.float32)

    out = attention_with_lora_forward(params, q, k, v)
    out = jax.block_until_ready(out)

    ref = _ref_forward(params, q, k, v)
    assert out.shape == (B, NQ, EMB), out.shape
    max_err = float(jnp.max(jnp.abs(out - ref)))
    # Tolerance covers bf16 weight/activation quantization vs the f32 reference
    # (normalization itself is exact; no approx reciprocal in the kernel).
    assert jnp.allclose(out, ref, atol=2e-2, rtol=2e-2), max_err

    print("KERNEL_OK")
</pallas_src>

<mosaic_0001>
module attributes {stable_mosaic.version = 11 : i64} {
  func.func @_linear_kernel(%arg0: i32, %arg1: memref<16x32xbf16, #tpu.memory_space<vmem>>, %arg2: memref<32x32xbf16, #tpu.memory_space<vmem>>, %arg3: memref<1x32xf32, #tpu.memory_space<vmem>>, %arg4: memref<16x32xbf16, #tpu.memory_space<vmem>>) attributes {dimension_semantics = [#tpu.dimension_semantics<parallel>], iteration_bounds = array<i64: 1>, scalar_prefetch = 0 : i64, scratch_operands = 0 : i64, tpu.core_type = #tpu.core_type<tc>, window_params = [{transform_indices = @transform_0, window_bounds = array<i64: 16, 32>}, {pipeline_mode = #tpu.pipeline_mode<synchronous>, transform_indices = @transform_1, window_bounds = array<i64: 32, 32>}, {pipeline_mode = #tpu.pipeline_mode<synchronous>, transform_indices = @transform_2, window_bounds = array<i64: 1, 32>}, {transform_indices = @transform_3, window_bounds = array<i64: 16, 32>}]} {
    %c0 = arith.constant 0 : index
    %c0_0 = arith.constant 0 : index
    %0 = vector.load %arg1[%c0, %c0_0] : memref<16x32xbf16, #tpu.memory_space<vmem>>, vector<16x32xbf16>
    %c0_1 = arith.constant 0 : index
    %c0_2 = arith.constant 0 : index
    %1 = vector.load %arg2[%c0_1, %c0_2] : memref<32x32xbf16, #tpu.memory_space<vmem>>, vector<32x32xbf16>
    %cst = arith.constant dense<0.000000e+00> : vector<16x32xf32>
    %2 = tpu.matmul %0, %1, %cst {dimension_numbers = #tpu.dot_dimension_numbers<[1], [0], [0], [1], [0, 0, 1, 1], [], []>} : vector<16x32xbf16>, vector<32x32xbf16>, vector<16x32xf32> -> vector<16x32xf32>
    %c0_3 = arith.constant 0 : index
    %c0_4 = arith.constant 0 : index
    %3 = vector.load %arg3[%c0_3, %c0_4] : memref<1x32xf32, #tpu.memory_space<vmem>>, vector<1x32xf32>
    %4 = vector.broadcast %3 : vector<1x32xf32> to vector<16x32xf32>
    %5 = arith.addf %2, %4 : vector<16x32xf32>
    %6 = arith.truncf %5 : vector<16x32xf32> to vector<16x32xbf16>
    %c0_5 = arith.constant 0 : index
    %c0_6 = arith.constant 0 : index
    %7 = vector.load %arg4[%c0_5, %c0_6] : memref<16x32xbf16, #tpu.memory_space<vmem>>, vector<16x32xbf16>
    tpu.vector_store %arg4[%c0_5, %c0_6], %6 {strides = array<i32>} : memref<16x32xbf16, #tpu.memory_space<vmem>>, vector<16x32xbf16>,
    return
  }
  func.func @transform_0(%arg0: i32) -> (i32, i32) {
    %c0_i32 = arith.constant 0 : i32
    %c0_i32_0 = arith.constant 0 : i32
    return %arg0, %c0_i32 : i32, i32
  }
  func.func @transform_1(%arg0: i32) -> (i32, i32) {
    %c0_i32 = arith.constant 0 : i32
    %c0_i32_0 = arith.constant 0 : i32
    %c0_i32_1 = arith.constant 0 : i32
    return %c0_i32, %c0_i32_0 : i32, i32
  }
  func.func @transform_2(%arg0: i32) -> (i32, i32) {
    %c0_i32 = arith.constant 0 : i32
    %c0_i32_0 = arith.constant 0 : i32
    %c0_i32_1 = arith.constant 0 : i32
    return %c0_i32, %c0_i32_0 : i32, i32
  }
  func.func @transform_3(%arg0: i32) -> (i32, i32) {
    %c0_i32 = arith.constant 0 : i32
    %c0_i32_0 = arith.constant 0 : i32
    return %arg0, %c0_i32 : i32, i32
  }
}

</mosaic_0001>

<llo_original>
// kernel: tpu_custom_call.1
$region0: #{tpu_custom_call.1}
  #allocation0 [shape = 'u32[]', space=smem, size = 0x4, offset = 0x4, fixed_abs, tag = 'smem constant byte address 0x4 - core index']
  #allocation1 [shape = 'u32[144,128]{1,0:T(1,128)}', space=vmem, size = 0x12000, scoped, tag = 'internal scratch']
  %s0 = inlined_call_operand.hbm [shape: bf16[16,32], index: 0, kind: input, shape index: {}]
  %s1 = inlined_call_operand.hbm [shape: bf16[32,32], index: 1, kind: input, shape index: {}]
  %s2 = inlined_call_operand.vmem [shape: f32[1,32], index: 2, kind: input, shape index: {}]
  %s3 = inlined_call_operand.hbm [shape: bf16[16,32], index: 3, kind: output, shape index: {}]
  %s4 = sld [smem:[#allocation0]]
  $region30: #{tpu_custom_call.1} parent=0
    _
  %s6 = ssub.s32 1, %s4
  %s7 = scalar_select 0, %s6, %s4
  $region1: #{tpu_custom_call.1} parent=0
    #allocation2 [shape = 'u8[4096]{0}', space=vmem, size = 0x1000, scoped, tag = 'input window, operand 0, single buffered']
    #allocation3 [shape = 's32[1]{0}', space=sflag, size = 0x4, scoped, tag = 'scoped memory for tpu_custom_call.1']
    #allocation4 [shape = 's32[1]{0}', space=sflag, size = 0x4, scoped, tag = 'scoped memory for tpu_custom_call.1']
    #allocation5 [shape = 'u8[8192]{0}', space=vmem, size = 0x2000, scoped, tag = 'input window, operand 1, single buffered']
    #allocation6 [shape = 's32[1]{0}', space=sflag, size = 0x4, scoped, tag = 'scoped memory for tpu_custom_call.1']
    #allocation7 [shape = 'u8[4096]{0}', space=vmem, size = 0x1000, scoped, tag = 'output window, operand 0, single buffered']
    %8 = vsyncpa [#allocation3], 0
    %9 = vsyncpa [#allocation6], 0
    %10 = vsyncpa [#allocation4], 0
    // Predicated region
    $region2: #{tpu_custom_call.1} parent=1 // pred_check
      _
    $region3: #{tpu_custom_call.1} parent=1 // pred_check_branch
      %12 = sbr.rel (0) target = $region5
    $region4: #{tpu_custom_call.1} parent=1 // pred_region
      %s14 = ssub.s32 128, 128
      %15 = vsyncadd [#allocation3], %s14
      %s16 = sshll.u32 [#allocation2], 4
      %s17 = int_to_ptr.vmem [resolvable:$true] %s16
      %22 = dma.hbm_to_vmem [thread:$0]  %s0, 128, %s17, [#allocation3], 64, 64, 4
    $region5: #{tpu_custom_call.1} parent=1 // pred_fallthru
      _
    // Predicated region
    $region6: #{tpu_custom_call.1} parent=1 // pred_check
      _
    $region7: #{tpu_custom_call.1} parent=1 // pred_check_branch
      %24 = sbr.rel (0) target = $region9
    $region8: #{tpu_custom_call.1} parent=1 // pred_region
      %s26 = ssub.s32 256, 256
      %27 = vsyncadd [#allocation6], %s26
      %s28 = sshll.u32 [#allocation5], 4
      %s29 = int_to_ptr.vmem [resolvable:$true] %s28
      %34 = dma.hbm_to_vmem [thread:$0]  %s1, 256, %s29, [#allocation6], 64, 64, 4
    $region9: #{tpu_custom_call.1} parent=1 // pred_fallthru
      _
    // Predicated region
    $region10: #{tpu_custom_call.1} parent=1 // pred_check
      _
    $region11: #{tpu_custom_call.1} parent=1 // pred_check_branch
      %36 = sbr.rel (0) target = $region13
    $region12: #{tpu_custom_call.1} parent=1 // pred_region
      _
    $region13: #{tpu_custom_call.1} parent=1 // pred_fallthru
      _
    // Predicated region
    $region14: #{tpu_custom_call.1} parent=1 // pred_check
      _
    $region15: #{tpu_custom_call.1} parent=1 // pred_check_branch
      %38 = sbr.rel (0) target = $region17
    $region16: #{tpu_custom_call.1} parent=1 // pred_region
      %39 = dma.done [#allocation3], 128
    $region17: #{tpu_custom_call.1} parent=1 // pred_fallthru
      _
    // Predicated region
    $region18: #{tpu_custom_call.1} parent=1 // pred_check
      _
    $region19: #{tpu_custom_call.1} parent=1 // pred_check_branch
      %41 = sbr.rel (0) target = $region21
    $region20: #{tpu_custom_call.1} parent=1 // pred_region
      %42 = dma.done [#allocation6], 256
    $region21: #{tpu_custom_call.1} parent=1 // pred_fallthru
      _
    %v44 = vld [vmem:[#allocation2] sm:$0xf]
    %v45 = vld [vmem:[#allocation2 + $0x4] sm:$0xf]
    %v46 = vld [vmem:[#allocation5] sm:$0xf]
    %v47 = vld [vmem:[#allocation5 + $0x4] sm:$0xf]
    %v48 = vld [vmem:[#allocation5 + $0x8] sm:$0xf]
    %v49 = vld [vmem:[#allocation5 + $0xc] sm:$0xf]
    %v50 = vld [vmem:[%s2] sm:$0x1]
    %v52 = vlaneseq
    %v53 = vshrl.u32 %v52, 7
    %v54 = vsub.s32 0, %v53
    %v55 = vrot.slane %v50, %v54
    %v59 = vunpack.c.l.b16 %v44
    %v60 = vunpack.c.l.b16 %v45
    %v61 = vpack.c.b16 %v60, %v59
    %v66 = vunpack.c.l.b16 %v46
    %v67 = vunpack.c.l.b16 %v47
    %v68 = vunpack.c.l.b16 %v48
    %v69 = vunpack.c.l.b16 %v49
    %v70 = vpack.c.b16 %v67, %v66
    %v71 = vpack.c.b16 %v69, %v68
    %vm74 = vcmask 261120
    %v76 = vsel %vm74, %v61, 0
    %78 = vmatprep.subr.bf16.mxu0 0
    %79 = vmatpush1.bf16.msra.mxu0 0
    %80 = vmatprep.subr.bf16.mxu0 0
    %81 = vmatpush1.bf16.msra.mxu0 0
    %82 = vmatprep.subr.bf16.mxu0 0
    %83 = vmatpush1.bf16.msra.mxu0 0
    %84 = vmatprep.subr.bf16.mxu0 0
    %85 = vmatpush1.bf16.msra.mxu0 0
    %86 = vmatprep.subr.bf16.mxu0 0
    %87 = vmatpush1.bf16.msra.mxu0 0
    %88 = vmatprep.subr.bf16.mxu0 0
    %89 = vmatpush1.bf16.msra.mxu0 0
    %90 = vmatprep.subr.bf16.mxu0 0
    %91 = vmatpush1.bf16.msra.mxu0 %v71
    %92 = vmatprep.subr.bf16.mxu0 0
    %93 = vmatpush1.bf16.msra.mxu0 %v70
    %94 = vmatprep.subr.bf16.mxu0 0
    %95 = vmatpush2.bf16.msra.mxu0 0
    %96 = vmatprep.subr.bf16.mxu0 0
    %97 = vmatpush2.bf16.msra.mxu0 0
    %98 = vmatprep.subr.bf16.mxu0 0
    %99 = vmatpush2.bf16.msra.mxu0 0
    %100 = vmatprep.subr.bf16.mxu0 0
    %101 = vmatpush2.bf16.msra.mxu0 0
    %102 = vmatprep.subr.bf16.mxu0 0
    %103 = vmatpush2.bf16.msra.mxu0 0
    %104 = vmatprep.subr.bf16.mxu0 0
    %105 = vmatpush2.bf16.msra.mxu0 0
    %106 = vmatprep.subr.bf16.mxu0 0
    %107 = vmatpush2.bf16.msra.mxu0 0
    %108 = vmatprep.subr.bf16.mxu0 0
    %109 = vmatpush2.bf16.msra.mxu0 0
    %110 = vmatprep.mubr.bf16.mxu0 0
    %111 = vmatmul.mubr.bf16.gmra.mxu0 %v76
    %v112 = vpop.f32.mrf.mxu0
    %v113 = vadd.f32 %v55, %v112
    %v114 = vpop.f32.mrf.mxu0
    %v115 = vpop.f32.mrf.mxu0
    %v116 = vadd.f32 %v55, %v115
    %v117 = vpop.f32.mrf.mxu0
    %118 = vdwg.mxu0
    %v119 = vpack.c.bf16 %v116, %v113
    %v121 = vunpack.c.l.b16 %v119
    %v122 = vunpack.c.h.b16 %v119
    %v123 = vpack.c.b16 %v121, %v121
    %v124 = vpack.c.b16 %v122, %v122
    %vm127 = vcmask 257024
    %128 = vst.msk [vmem:[#allocation7] sm:$0xf] %vm127, %v123
    %129 = vst.msk [vmem:[#allocation7 + $0x4] sm:$0xf] %vm127, %v124
    // Predicated region
    $region22: #{tpu_custom_call.1} parent=1 // pred_check
      _
    $region23: #{tpu_custom_call.1} parent=1 // pred_check_branch
      %131 = sbr.rel (0) target = $region25
    $region24: #{tpu_custom_call.1} parent=1 // pred_region
      %s133 = ssub.s32 128, 128
      %134 = vsyncadd [#allocation4], %s133
      %s135 = sshll.u32 [#allocation7], 4
      %s136 = int_to_ptr.vmem [resolvable:$true] %s135
      %141 = dma.vmem_to_hbm [thread:$0]  %s136, 128, %s3, [#allocation4], 64, 64, 4
    $region25: #{tpu_custom_call.1} parent=1 // pred_fallthru
      _
    // Predicated region
    $region26: #{tpu_custom_call.1} parent=1 // pred_check
      _
    $region27: #{tpu_custom_call.1} parent=1 // pred_check_branch
      %143 = sbr.rel (0) target = $region29
    $region28: #{tpu_custom_call.1} parent=1 // pred_region
      %144 = dma.done [#allocation4], 128
    $region29: #{tpu_custom_call.1} parent=1 // pred_fallthru
      _
    %145 = vsyncpa [#allocation3], 1
    %146 = vsyncpa [#allocation6], 1
    %147 = vsyncpa [#allocation4], 1

</llo_original>
